<compile_context>
chip_gen: v7x
topology: tpu7x:2x2x1
jax: 0.10.0
libtpu: 0.0.40
codegen_flags: <defaults>
</compile_context>

<pallas_src>
import functools

import jax
import jax.numpy as jnp
from jax.experimental import pallas as pl
from jax.experimental.pallas import tpu as pltpu

_NEG_FILL = -1e30  # kills padded logit columns in the softmax (exp -> 0)


def _round_up(x, m):
    return (x + m - 1) // m * m


def _cdiv(a, b):
    return -(-a // b)


# ---------------------------------------------------------------------------
# Hardware probing (generation-aware sizing).
# ---------------------------------------------------------------------------
def _tpu_hw():
    vmem_phys = 128 * 1024 * 1024          # v5e / v6e default
    num_tc = 1
    kind = ""
    try:
        kind = jax.devices()[0].device_kind.lower()
    except Exception:
        pass
    try:
        info = pltpu.get_tpu_info()
        v = getattr(info, "vmem_capacity_bytes", None)
        if v:
            vmem_phys = int(v)
        for attr in ("num_cores", "cores_per_chip", "num_tensorcores"):
            c = getattr(info, attr, None)
            if isinstance(c, int) and c > 0:
                num_tc = c
                break
    except Exception:
        if "v7" in kind:
            vmem_phys = 64 * 1024 * 1024   # v7x: 64 MiB per TensorCore
    if num_tc <= 1 and any(t in kind for t in ("v7", "v4", "v5p")):
        num_tc = 2                         # 2 TensorCores share the chip
    is_v5e = ("v5e" in kind) or ("v5 lite" in kind) or ("v5lite" in kind)
    return {
        "vmem_phys": vmem_phys,
        "num_tc": num_tc,
        "row_granule": 128 if is_v5e else 256,   # MXU M-dim granularity
        "bf16_vpu": not is_v5e,                  # v6e/v7x have a bf16 VALU
    }


def _vmem_plan(hw):
    phys = hw["vmem_phys"]
    # ~52 MiB of 64 (v7x), ~104 MiB of 128 (v5e/v6e): leave headroom below
    # physical for Mosaic internal scratch and the input/output double buffers.
    vmem_limit = int(phys) * 13 // 16
    tile_budget = max(vmem_limit - 8 * 1024 * 1024, vmem_limit // 2)
    return vmem_limit, tile_budget


def _single_buffer_mode():
    """Probe pl.Buffered(1) + pipeline_mode support on a dummy BlockSpec.

    Returns the pipeline_mode object if supported, else None (so the tile
    plan can be sized for default double-buffered weights instead)."""
    try:
        mode = pl.Buffered(1)
        pl.BlockSpec((8, 128), lambda i: (0, 0), pipeline_mode=mode)
        return mode
    except Exception:
        return None


# ---------------------------------------------------------------------------
# Tile planning.
# ---------------------------------------------------------------------------
def _auto_tile_n(n_rows, widths_p, resident_param_bytes, *,
                 x_bytes, out_bytes, act_bytes,
                 tile_budget, min_grid_steps, row_granule):
    n8 = _round_up(max(n_rows, 1), 8)
    # Per-row VMEM: double-buffered x tile + double-buffered out tile
    # + f32 matmul result + one activation working copy at the widest layer.
    per_row = (2 * x_bytes * widths_p[0]
               + 2 * out_bytes * widths_p[-1]
               + 4 * max(widths_p)
               + act_bytes * max(widths_p))
    # TODO(synk): models whose padded weights exceed tile_budget need a
    # K/width-tiled grid with a VMEM f32 accumulator (pl.when init/finalize)
    # instead of degrading the batch tile toward 8 rows.
    avail = max(tile_budget - resident_param_bytes, 8 * per_row)
    max_rows = max(8, (min(int(avail // per_row), 1024) // 8) * 8)
    # Enough grid steps to (a) fit the VMEM budget and (b) feed every
    # TensorCore (the "parallel" batch axis shards across TCs), while keeping
    # batch-pad waste bounded by balancing the tiles with cdiv.
    steps = max(_cdiv(n8, max_rows), min(max(1, min_grid_steps), n8 // 8))
    tile_n = _round_up(_cdiv(n8, steps), 8)
    # Round up to an MXU-friendly granule only if waste and VMEM stay bounded.
    if tile_n > row_granule:
        cand = _round_up(tile_n, row_granule)
        waste = _cdiv(n8, cand) * cand - n8
        if cand <= max_rows and waste <= max(n8 // 8, 8):
            tile_n = cand
    return int(min(tile_n, max_rows))


# ---------------------------------------------------------------------------
# Kernel.
# ---------------------------------------------------------------------------
def _ptdeep_kernel(num_layers, act_dtype, x_ref, *refs):
    # refs = (w_0..w_{L-1}, b_0..b_{L-1}, out_ref)
    w_refs = refs[:num_layers]
    b_refs = refs[num_layers:2 * num_layers]
    out_ref = refs[2 * num_layers]

    h = x_ref[...]
    for i in range(num_layers):
        # MXU matmul, always accumulating in f32.  When x/activations already
        # match the weight dtype (bf16 fast path) no per-layer cast is emitted.
        lhs = h if h.dtype == w_refs[i].dtype else h.astype(w_refs[i].dtype)
        z = jnp.dot(lhs, w_refs[i][...], preferred_element_type=jnp.float32)
        z = z + b_refs[i][...]              # (1, D) f32 bias broadcasts
        if i < num_layers - 1:
            h = jnp.maximum(z, 0.0).astype(act_dtype)   # activation = ReLU
        else:
            h = z                            # f32 logits

    # Numerically-stable row softmax (dim=1), exact normalization.
    m = jnp.max(h, axis=1, keepdims=True)
    e = jnp.exp(h - m)
    denom = jnp.sum(e, axis=1, keepdims=True)
    out_ref[...] = (e / denom).astype(out_ref.dtype)


def _build_pallas_call(num_layers, act_dtype, tile_n, d_in_p, d_out_p,
                       w_shapes, b_shapes, n_p, out_dtype, vmem_limit,
                       buffered_one):
    def const_spec(shape):
        # Grid-invariant blocks: a second pipeline buffer buys nothing.
        if buffered_one is not None:
            return pl.BlockSpec(shape, lambda i: (0, 0),
                                pipeline_mode=buffered_one)
        return pl.BlockSpec(shape, lambda i: (0, 0))

    in_specs = [pl.BlockSpec((tile_n, d_in_p), lambda i: (i, 0))]
    in_specs += [const_spec(s) for s in w_shapes]
    in_specs += [const_spec(s) for s in b_shapes]
    out_spec = pl.BlockSpec((tile_n, d_out_p), lambda i: (i, 0))

    return pl.pallas_call(
        functools.partial(_ptdeep_kernel, num_layers, act_dtype),
        out_shape=jax.ShapeDtypeStruct((n_p, d_out_p), out_dtype),
        grid_spec=pltpu.PrefetchScalarGridSpec(
            num_scalar_prefetch=0,
            grid=(n_p // tile_n,),
            in_specs=in_specs,
            out_specs=out_spec,
        ),
        compiler_params=pltpu.CompilerParams(
            dimension_semantics=("parallel",),
            vmem_limit_bytes=vmem_limit,
        ),
    )


# ---------------------------------------------------------------------------
# Wrapper.
# ---------------------------------------------------------------------------
def ptdeep_forward(x, weights, biases, *, tile_n=None, use_bf16=False,
                   out_dtype=jnp.float32):
    """Pallas forward pass of PTDeep (ReLU hidden layers + row softmax).

    x:       [N, config[0]] float32 (1-D input is treated as a single row).
    weights: list of [config[i], config[i+1]] float32.
    biases:  list of [1, config[i+1]] float32.
    returns: [N, config[-1]] float32 row-softmax probabilities.
    """
    if x.ndim == 1:                        # mirrors h.unsqueeze(0) in the module
        x = x[None, :]
    num_layers = len(weights)
    N, d_in = x.shape
    widths = [d_in] + [w.shape[1] for w in weights]
    widths_p = [_round_up(w, 128) for w in widths]     # lane-dense layers

    hw = _tpu_hw()
    vmem_limit, tile_budget = _vmem_plan(hw)

    x_dtype = jnp.bfloat16 if use_bf16 else jnp.float32
    act_dtype = jnp.bfloat16 if (use_bf16 and hw["bf16_vpu"]) else jnp.float32

    # --- pad params/inputs to lane-dense widths (done once in the wrapper) ---
    x_p = jnp.pad(x.astype(x_dtype), ((0, 0), (0, widths_p[0] - widths[0])))
    w_p, b_p = [], []
    for i, (w, b) in enumerate(zip(weights, biases)):
        wp = jnp.pad(w.astype(jnp.float32),
                     ((0, widths_p[i] - widths[i]),
                      (0, widths_p[i + 1] - widths[i + 1])))
        if use_bf16:
            wp = wp.astype(jnp.bfloat16)    # MXU fast path; accum stays f32
        pad_cols = widths_p[i + 1] - widths[i + 1]
        fill = _NEG_FILL if i == num_layers - 1 else 0.0
        bp = jnp.pad(b.reshape(1, -1).astype(jnp.float32),
                     ((0, 0), (0, pad_cols)), constant_values=fill)
        w_p.append(wp)
        b_p.append(bp)

    buffered_one = _single_buffer_mode()
    weight_bytes = sum(int(a.size) * a.dtype.itemsize for a in w_p + b_p)
    # Sizing consistent with the buffering mode actually used.
    resident_bytes = weight_bytes if buffered_one is not None else 2 * weight_bytes

    if tile_n is None:
        tile_n = _auto_tile_n(
            N, widths_p, resident_bytes,
            x_bytes=jnp.dtype(x_dtype).itemsize,
            out_bytes=jnp.dtype(out_dtype).itemsize,
            act_bytes=jnp.dtype(act_dtype).itemsize,
            tile_budget=tile_budget,
            min_grid_steps=hw["num_tc"],
            row_granule=hw["row_granule"],
        )
    tile_n = max(8, _round_up(int(tile_n), 8))

    n_p = _round_up(N, tile_n)
    if n_p != N:
        x_p = jnp.pad(x_p, ((0, n_p - N), (0, 0)))

    call = _build_pallas_call(
        num_layers, act_dtype, tile_n, widths_p[0], widths_p[-1],
        [a.shape for a in w_p], [a.shape for a in b_p],
        n_p, out_dtype, vmem_limit, buffered_one)
    out_p = call(x_p, *w_p, *b_p)
    return out_p[:N, :widths[-1]].astype(jnp.float32)


def _reference_forward(x, weights, biases):
    h = x if x.ndim > 1 else x[None, :]
    for i in range(len(weights) - 1):
        h = jnp.maximum(h @ weights[i] + biases[i], 0.0)
    logits = h @ weights[-1] + biases[-1]
    logits = logits - jnp.max(logits, axis=1, keepdims=True)
    return jax.nn.softmax(logits, axis=1)


if __name__ == "__main__":
    # config mirrors PTDeep.__init__: weights (config[i], config[i+1]) ~ randn,
    # biases (1, config[i+1]) zeros.
    config = [16, 32, 32, 10]
    N = 12  # deliberately not a multiple of 8: exercises batch padding + slice

    key = jax.random.PRNGKey(0)
    keys = jax.random.split(key, len(config))  # one for x, rest for weights

    x = jax.random.normal(keys[0], (N, config[0]), dtype=jnp.float32)
    weights = [
        jax.random.normal(keys[i + 1], (config[i], config[i + 1]),
                          dtype=jnp.float32)
        for i in range(len(config) - 1)
    ]
    biases = [
        jnp.zeros((1, config[i + 1]), dtype=jnp.float32)
        for i in range(len(config) - 1)
    ]

    probs = jax.block_until_ready(ptdeep_forward(x, weights, biases))
    ref = _reference_forward(x, weights, biases)

    assert probs.shape == (N, config[-1])
    assert bool(jnp.all(jnp.isfinite(probs)))
    assert jnp.allclose(jnp.sum(probs, axis=1), 1.0, atol=1e-3)
    assert jnp.allclose(probs, ref, atol=5e-3, rtol=1e-2), "mismatch vs JAX ref"
    assert bool(jnp.all(jnp.argmax(probs, axis=1) == jnp.argmax(ref, axis=1)))

    # Larger batch: exercises multi-step grid / granule rounding / bounded
    # batch-pad waste.
    N2 = 300
    x2 = jax.random.normal(jax.random.PRNGKey(1), (N2, config[0]),
                           dtype=jnp.float32)
    probs2 = jax.block_until_ready(ptdeep_forward(x2, weights, biases))
    ref2 = _reference_forward(x2, weights, biases)
    assert probs2.shape == (N2, config[-1])
    assert bool(jnp.all(jnp.isfinite(probs2)))
    assert jnp.allclose(jnp.sum(probs2, axis=1), 1.0, atol=1e-3)
    assert jnp.allclose(probs2, ref2, atol=5e-3, rtol=1e-2)

    # bf16 fast path (bf16 x/weights, bf16 hidden activations on v6e/v7x,
    # f32 MXU accumulation + f32 softmax): exercise + sanity-check.
    probs_bf16 = jax.block_until_ready(
        ptdeep_forward(x, weights, biases, use_bf16=True))
    assert probs_bf16.shape == (N, config[-1])
    assert bool(jnp.all(jnp.isfinite(probs_bf16)))
    assert jnp.allclose(jnp.sum(probs_bf16, axis=1), 1.0, atol=1e-2)

    print("KERNEL_OK")
</pallas_src>

<mosaic_0001>
module attributes {stable_mosaic.version = 11 : i64} {
  func.func @_ptdeep_kernel(%arg0: i32, %arg1: memref<16x128xf32, #tpu.memory_space<vmem>>, %arg2: memref<128x128xf32, #tpu.memory_space<vmem>>, %arg3: memref<128x128xf32, #tpu.memory_space<vmem>>, %arg4: memref<128x128xf32, #tpu.memory_space<vmem>>, %arg5: memref<1x128xf32, #tpu.memory_space<vmem>>, %arg6: memref<1x128xf32, #tpu.memory_space<vmem>>, %arg7: memref<1x128xf32, #tpu.memory_space<vmem>>, %arg8: memref<16x128xf32, #tpu.memory_space<vmem>>) attributes {dimension_semantics = [#tpu.dimension_semantics<parallel>], iteration_bounds = array<i64: 1>, scalar_prefetch = 0 : i64, scratch_operands = 0 : i64, tpu.core_type = #tpu.core_type<tc>, window_params = [{transform_indices = @transform_0, window_bounds = array<i64: 16, 128>}, {pipeline_mode = #tpu.pipeline_mode<synchronous>, transform_indices = @transform_1, window_bounds = array<i64: 128, 128>}, {pipeline_mode = #tpu.pipeline_mode<synchronous>, transform_indices = @transform_2, window_bounds = array<i64: 128, 128>}, {pipeline_mode = #tpu.pipeline_mode<synchronous>, transform_indices = @transform_3, window_bounds = array<i64: 128, 128>}, {pipeline_mode = #tpu.pipeline_mode<synchronous>, transform_indices = @transform_4, window_bounds = array<i64: 1, 128>}, {pipeline_mode = #tpu.pipeline_mode<synchronous>, transform_indices = @transform_5, window_bounds = array<i64: 1, 128>}, {pipeline_mode = #tpu.pipeline_mode<synchronous>, transform_indices = @transform_6, window_bounds = array<i64: 1, 128>}, {transform_indices = @transform_7, window_bounds = array<i64: 16, 128>}]} {
    %c0 = arith.constant 0 : index
    %c0_0 = arith.constant 0 : index
    %0 = vector.load %arg1[%c0, %c0_0] : memref<16x128xf32, #tpu.memory_space<vmem>>, vector<16x128xf32>
    %c0_1 = arith.constant 0 : index
    %c0_2 = arith.constant 0 : index
    %1 = vector.load %arg2[%c0_1, %c0_2] : memref<128x128xf32, #tpu.memory_space<vmem>>, vector<128x128xf32>
    %cst = arith.constant dense<0.000000e+00> : vector<16x128xf32>
    %2 = tpu.matmul %0, %1, %cst {dimension_numbers = #tpu.dot_dimension_numbers<[1], [0], [0], [1], [0, 0, 1, 1], [], []>} : vector<16x128xf32>, vector<128x128xf32>, vector<16x128xf32> -> vector<16x128xf32>
    %c0_3 = arith.constant 0 : index
    %c0_4 = arith.constant 0 : index
    %3 = vector.load %arg5[%c0_3, %c0_4] : memref<1x128xf32, #tpu.memory_space<vmem>>, vector<1x128xf32>
    %4 = vector.broadcast %3 : vector<1x128xf32> to vector<16x128xf32>
    %5 = arith.addf %2, %4 : vector<16x128xf32>
    %cst_5 = arith.constant 0.000000e+00 : f32
    %6 = vector.broadcast %cst_5 : f32 to vector<16x128xf32>
    %7 = arith.maximumf %5, %6 : vector<16x128xf32>
    %c0_6 = arith.constant 0 : index
    %c0_7 = arith.constant 0 : index
    %8 = vector.load %arg3[%c0_6, %c0_7] : memref<128x128xf32, #tpu.memory_space<vmem>>, vector<128x128xf32>
    %cst_8 = arith.constant dense<0.000000e+00> : vector<16x128xf32>
    %9 = tpu.matmul %7, %8, %cst_8 {dimension_numbers = #tpu.dot_dimension_numbers<[1], [0], [0], [1], [0, 0, 1, 1], [], []>} : vector<16x128xf32>, vector<128x128xf32>, vector<16x128xf32> -> vector<16x128xf32>
    %c0_9 = arith.constant 0 : index
    %c0_10 = arith.constant 0 : index
    %10 = vector.load %arg6[%c0_9, %c0_10] : memref<1x128xf32, #tpu.memory_space<vmem>>, vector<1x128xf32>
    %11 = vector.broadcast %10 : vector<1x128xf32> to vector<16x128xf32>
    %12 = arith.addf %9, %11 : vector<16x128xf32>
    %cst_11 = arith.constant 0.000000e+00 : f32
    %13 = vector.broadcast %cst_11 : f32 to vector<16x128xf32>
    %14 = arith.maximumf %12, %13 : vector<16x128xf32>
    %c0_12 = arith.constant 0 : index
    %c0_13 = arith.constant 0 : index
    %15 = vector.load %arg4[%c0_12, %c0_13] : memref<128x128xf32, #tpu.memory_space<vmem>>, vector<128x128xf32>
    %cst_14 = arith.constant dense<0.000000e+00> : vector<16x128xf32>
    %16 = tpu.matmul %14, %15, %cst_14 {dimension_numbers = #tpu.dot_dimension_numbers<[1], [0], [0], [1], [0, 0, 1, 1], [], []>} : vector<16x128xf32>, vector<128x128xf32>, vector<16x128xf32> -> vector<16x128xf32>
    %c0_15 = arith.constant 0 : index
    %c0_16 = arith.constant 0 : index
    %17 = vector.load %arg7[%c0_15, %c0_16] : memref<1x128xf32, #tpu.memory_space<vmem>>, vector<1x128xf32>
    %18 = vector.broadcast %17 : vector<1x128xf32> to vector<16x128xf32>
    %19 = arith.addf %16, %18 : vector<16x128xf32>
    %cst_17 = arith.constant dense<0xFF800000> : vector<16xf32>
    %20 = vector.multi_reduction <maximumf>, %19, %cst_17 [1] : vector<16x128xf32> to vector<16xf32>
    %21 = vector.shape_cast %20 : vector<16xf32> to vector<16x1xf32>
    %22 = vector.broadcast %21 : vector<16x1xf32> to vector<16x128xf32>
    %23 = arith.subf %19, %22 : vector<16x128xf32>
    %24 = math.exp %23 : vector<16x128xf32>
    %cst_18 = arith.constant dense<0.000000e+00> : vector<16xf32>
    %25 = vector.multi_reduction <add>, %24, %cst_18 [1] : vector<16x128xf32> to vector<16xf32>
    %26 = vector.shape_cast %25 : vector<16xf32> to vector<16x1xf32>
    %27 = vector.broadcast %26 : vector<16x1xf32> to vector<16x128xf32>
    %28 = arith.divf %24, %27 : vector<16x128xf32>
    %c0_19 = arith.constant 0 : index
    %c0_20 = arith.constant 0 : index
    %29 = vector.load %arg8[%c0_19, %c0_20] : memref<16x128xf32, #tpu.memory_space<vmem>>, vector<16x128xf32>
    tpu.vector_store %arg8[%c0_19, %c0_20], %28 {strides = array<i32>} : memref<16x128xf32, #tpu.memory_space<vmem>>, vector<16x128xf32>,
    return
  }
  func.func @transform_0(%arg0: i32) -> (i32, i32) {
    %c0_i32 = arith.constant 0 : i32
    %c0_i32_0 = arith.constant 0 : i32
    return %arg0, %c0_i32 : i32, i32
  }
  func.func @transform_1(%arg0: i32) -> (i32, i32) {
    %c0_i32 = arith.constant 0 : i32
    %c0_i32_0 = arith.constant 0 : i32
    %c0_i32_1 = arith.constant 0 : i32
    return %c0_i32, %c0_i32_0 : i32, i32
  }
  func.func @transform_2(%arg0: i32) -> (i32, i32) {
    %c0_i32 = arith.constant 0 : i32
    %c0_i32_0 = arith.constant 0 : i32
    %c0_i32_1 = arith.constant 0 : i32
    return %c0_i32, %c0_i32_0 : i32, i32
  }
  func.func @transform_3(%arg0: i32) -> (i32, i32) {
    %c0_i32 = arith.constant 0 : i32
    %c0_i32_0 = arith.constant 0 : i32
    %c0_i32_1 = arith.constant 0 : i32
    return %c0_i32, %c0_i32_0 : i32, i32
  }
  func.func @transform_4(%arg0: i32) -> (i32, i32) {
    %c0_i32 = arith.constant 0 : i32
    %c0_i32_0 = arith.constant 0 : i32
    %c0_i32_1 = arith.constant 0 : i32
    return %c0_i32, %c0_i32_0 : i32, i32
  }
  func.func @transform_5(%arg0: i32) -> (i32, i32) {
    %c0_i32 = arith.constant 0 : i32
    %c0_i32_0 = arith.constant 0 : i32
    %c0_i32_1 = arith.constant 0 : i32
    return %c0_i32, %c0_i32_0 : i32, i32
  }
  func.func @transform_6(%arg0: i32) -> (i32, i32) {
    %c0_i32 = arith.constant 0 : i32
    %c0_i32_0 = arith.constant 0 : i32
    %c0_i32_1 = arith.constant 0 : i32
    return %c0_i32, %c0_i32_0 : i32, i32
  }
  func.func @transform_7(%arg0: i32) -> (i32, i32) {
    %c0_i32 = arith.constant 0 : i32
    %c0_i32_0 = arith.constant 0 : i32
    return %arg0, %c0_i32 : i32, i32
  }
}

</mosaic_0001>

<llo_original>
// kernel: tpu_custom_call.1
$region0: #{tpu_custom_call.1}
  #allocation0 [shape = 'u32[]', space=smem, size = 0x4, offset = 0x4, fixed_abs, tag = 'smem constant byte address 0x4 - core index']
  #allocation1 [shape = 'u32[144,128]{1,0:T(1,128)}', space=vmem, size = 0x12000, scoped, tag = 'internal scratch']
  %s0 = inlined_call_operand.hbm [shape: f32[16,128], index: 0, kind: input, shape index: {}]
  %s1 = inlined_call_operand.hbm [shape: f32[128,128], index: 1, kind: input, shape index: {}]
  %s2 = inlined_call_operand.hbm [shape: f32[128,128], index: 2, kind: input, shape index: {}]
  %s3 = inlined_call_operand.hbm [shape: f32[128,128], index: 3, kind: input, shape index: {}]
  %s4 = inlined_call_operand.hbm [shape: f32[1,128], index: 4, kind: input, shape index: {}]
  %s5 = inlined_call_operand.hbm [shape: f32[1,128], index: 5, kind: input, shape index: {}]
  %s6 = inlined_call_operand.hbm [shape: f32[1,128], index: 6, kind: input, shape index: {}]
  %s7 = inlined_call_operand.hbm [shape: f32[16,128], index: 7, kind: output, shape index: {}]
  %s8 = sld [smem:[#allocation0]]
  $region66: #{tpu_custom_call.1} parent=0
    _
  %s10 = ssub.s32 1, %s8
  %s11 = scalar_select 0, %s10, %s8
  $region1: #{tpu_custom_call.1} parent=0
    #allocation2 [shape = 'u8[8192]{0}', space=vmem, size = 0x2000, scoped, tag = 'input window, operand 0, single buffered']
    #allocation3 [shape = 's32[1]{0}', space=sflag, size = 0x4, scoped, tag = 'scoped memory for tpu_custom_call.1']
    #allocation4 [shape = 's32[1]{0}', space=sflag, size = 0x4, scoped, tag = 'scoped memory for tpu_custom_call.1']
    #allocation5 [shape = 'u8[65536]{0}', space=vmem, size = 0x10000, scoped, tag = 'input window, operand 1, single buffered']
    #allocation6 [shape = 's32[1]{0}', space=sflag, size = 0x4, scoped, tag = 'scoped memory for tpu_custom_call.1']
    #allocation7 [shape = 'u8[65536]{0}', space=vmem, size = 0x10000, scoped, tag = 'input window, operand 2, single buffered']
    #allocation8 [shape = 'u8[65536]{0}', space=vmem, size = 0x10000, scoped, tag = 'input window, operand 3, single buffered']
    #allocation9 [shape = 's32[1]{0}', space=sflag, size = 0x4, scoped, tag = 'scoped memory for tpu_custom_call.1']
    #allocation10 [shape = 'u8[512]{0}', space=vmem, size = 0x400, scoped, tag = 'input window, operand 4, single buffered']
    #allocation11 [shape = 'u8[512]{0}', space=vmem, size = 0x400, scoped, tag = 'input window, operand 5, single buffered']
    #allocation12 [shape = 's32[1]{0}', space=sflag, size = 0x4, scoped, tag = 'scoped memory for tpu_custom_call.1']
    #allocation13 [shape = 'u8[512]{0}', space=vmem, size = 0x400, scoped, tag = 'input window, operand 6, single buffered']
    #allocation14 [shape = 'u8[8192]{0}', space=vmem, size = 0x2000, scoped, tag = 'output window, operand 0, single buffered']
    %12 = vsyncpa [#allocation3], 0
    %13 = vsyncpa [#allocation6], 0
    %14 = vsyncpa [#allocation9], 0
    %15 = vsyncpa [#allocation12], 0
    %16 = vsyncpa [#allocation4], 0
    // Predicated region
    $region2: #{tpu_custom_call.1} parent=1 // pred_check
      _
    $region3: #{tpu_custom_call.1} parent=1 // pred_check_branch
      %18 = sbr.rel (0) target = $region5
    $region4: #{tpu_custom_call.1} parent=1 // pred_region
      %s20 = ssub.s32 256, 256
      %21 = vsyncadd [#allocation3], %s20
      %s22 = sshll.u32 [#allocation2], 4
      %s23 = int_to_ptr.vmem [resolvable:$true] %s22
      %28 = dma.hbm_to_vmem [thread:$0]  %s0, 256, %s23, [#allocation3], 128, 128, 8
    $region5: #{tpu_custom_call.1} parent=1 // pred_fallthru
      _
    // Predicated region
    $region6: #{tpu_custom_call.1} parent=1 // pred_check
      _
    $region7: #{tpu_custom_call.1} parent=1 // pred_check_branch
      %30 = sbr.rel (0) target = $region9
    $region8: #{tpu_custom_call.1} parent=1 // pred_region
      %s32 = ssub.s32 2048, 2048
      %33 = vsyncadd [#allocation6], %s32
      %s34 = sshll.u32 [#allocation5], 4
      %s35 = int_to_ptr.vmem [resolvable:$true] %s34
      %40 = dma.hbm_to_vmem [thread:$0]  %s1, 2048, %s35, [#allocation6], 128, 128, 8
    $region9: #{tpu_custom_call.1} parent=1 // pred_fallthru
      _
    // Predicated region
    $region10: #{tpu_custom_call.1} parent=1 // pred_check
      _
    $region11: #{tpu_custom_call.1} parent=1 // pred_check_branch
      %42 = sbr.rel (0) target = $region13
    $region12: #{tpu_custom_call.1} parent=1 // pred_region
      %s44 = ssub.s32 2048, 2048
      %45 = vsyncadd [#allocation6], %s44
      %s46 = sshll.u32 [#allocation7], 4
      %s47 = int_to_ptr.vmem [resolvable:$true] %s46
      %52 = dma.hbm_to_vmem [thread:$0]  %s2, 2048, %s47, [#allocation6], 128, 128, 8
    $region13: #{tpu_custom_call.1} parent=1 // pred_fallthru
      _
    // Predicated region
    $region14: #{tpu_custom_call.1} parent=1 // pred_check
      _
    $region15: #{tpu_custom_call.1} parent=1 // pred_check_branch
      %54 = sbr.rel (0) target = $region17
    $region16: #{tpu_custom_call.1} parent=1 // pred_region
      %s56 = ssub.s32 2048, 2048
      %57 = vsyncadd [#allocation9], %s56
      %s58 = sshll.u32 [#allocation8], 4
      %s59 = int_to_ptr.vmem [resolvable:$true] %s58
      %64 = dma.hbm_to_vmem [thread:$0]  %s3, 2048, %s59, [#allocation9], 128, 128, 8
    $region17: #{tpu_custom_call.1} parent=1 // pred_fallthru
      _
    // Predicated region
    $region18: #{tpu_custom_call.1} parent=1 // pred_check
      _
    $region19: #{tpu_custom_call.1} parent=1 // pred_check_branch
      %66 = sbr.rel (0) target = $region21
    $region20: #{tpu_custom_call.1} parent=1 // pred_region
      %s68 = ssub.s32 16, 16
      %69 = vsyncadd [#allocation9], %s68
      %s71 = sshll.u32 [#allocation10], 4
      %s72 = int_to_ptr.vmem [resolvable:$true] %s71
      %74 = dma.hbm_to_vmem [thread:$0]  %s4, 16, %s72, [#allocation9]
    $region21: #{tpu_custom_call.1} parent=1 // pred_fallthru
      _
    // Predicated region
    $region22: #{tpu_custom_call.1} parent=1 // pred_check
      _
    $region23: #{tpu_custom_call.1} parent=1 // pred_check_branch
      %76 = sbr.rel (0) target = $region25
    $region24: #{tpu_custom_call.1} parent=1 // pred_region
      %s78 = ssub.s32 16, 16
      %79 = vsyncadd [#allocation12], %s78
      %s81 = sshll.u32 [#allocation11], 4
      %s82 = int_to_ptr.vmem [resolvable:$true] %s81
      %84 = dma.hbm_to_vmem [thread:$0]  %s5, 16, %s82, [#allocation12]
    $region25: #{tpu_custom_call.1} parent=1 // pred_fallthru
      _
    // Predicated region
    $region26: #{tpu_custom_call.1} parent=1 // pred_check
      _
    $region27: #{tpu_custom_call.1} parent=1 // pred_check_branch
      %86 = sbr.rel (0) target = $region29
    $region28: #{tpu_custom_call.1} parent=1 // pred_region
      %s88 = ssub.s32 16, 16
      %89 = vsyncadd [#allocation12], %s88
      %s91 = sshll.u32 [#allocation13], 4
      %s92 = int_to_ptr.vmem [resolvable:$true] %s91
      %94 = dma.hbm_to_vmem [thread:$0]  %s6, 16, %s92, [#allocation12]
    $region29: #{tpu_custom_call.1} parent=1 // pred_fallthru
      _
    // Predicated region
    $region30: #{tpu_custom_call.1} parent=1 // pred_check
      _
    $region31: #{tpu_custom_call.1} parent=1 // pred_check_branch
      %96 = sbr.rel (0) target = $region33
    $region32: #{tpu_custom_call.1} parent=1 // pred_region
      %97 = dma.done [#allocation3], 256
    $region33: #{tpu_custom_call.1} parent=1 // pred_fallthru
      _
    // Predicated region
    $region34: #{tpu_custom_call.1} parent=1 // pred_check
      _
    $region35: #{tpu_custom_call.1} parent=1 // pred_check_branch
      %99 = sbr.rel (0) target = $region37
    $region36: #{tpu_custom_call.1} parent=1 // pred_region
      %100 = dma.done [#allocation6], 2048
    $region37: #{tpu_custom_call.1} parent=1 // pred_fallthru
      _
    // Predicated region
    $region38: #{tpu_custom_call.1} parent=1 // pred_check
      _
    $region39: #{tpu_custom_call.1} parent=1 // pred_check_branch
      %102 = sbr.rel (0) target = $region41
    $region40: #{tpu_custom_call.1} parent=1 // pred_region
      %103 = dma.done [#allocation6], 2048
    $region41: #{tpu_custom_call.1} parent=1 // pred_fallthru
      _
    // Predicated region
    $region42: #{tpu_custom_call.1} parent=1 // pred_check
      _
    $region43: #{tpu_custom_call.1} parent=1 // pred_check_branch
      %105 = sbr.rel (0) target = $region45
    $region44: #{tpu_custom_call.1} parent=1 // pred_region
      %106 = dma.done [#allocation9], 2048
    $region45: #{tpu_custom_call.1} parent=1 // pred_fallthru
      _
    // Predicated region
    $region46: #{tpu_custom_call.1} parent=1 // pred_check
      _
    $region47: #{tpu_custom_call.1} parent=1 // pred_check_branch
      %108 = sbr.rel (0) target = $region49
    $region48: #{tpu_custom_call.1} parent=1 // pred_region
      %109 = dma.done [#allocation9], 16
    $region49: #{tpu_custom_call.1} parent=1 // pred_fallthru
      _
    // Predicated region
    $region50: #{tpu_custom_call.1} parent=1 // pred_check
      _
    $region51: #{tpu_custom_call.1} parent=1 // pred_check_branch
      %111 = sbr.rel (0) target = $region53
    $region52: #{tpu_custom_call.1} parent=1 // pred_region
      %112 = dma.done [#allocation12], 16
    $region53: #{tpu_custom_call.1} parent=1 // pred_fallthru
      _
    // Predicated region
    $region54: #{tpu_custom_call.1} parent=1 // pred_check
      _
    $region55: #{tpu_custom_call.1} parent=1 // pred_check_branch
      %114 = sbr.rel (0) target = $region57
    $region56: #{tpu_custom_call.1} parent=1 // pred_region
      %115 = dma.done [#allocation12], 16
    $region57: #{tpu_custom_call.1} parent=1 // pred_fallthru
      _
    %v116 = vld [vmem:[#allocation2] sm:$0xff]
    %v117 = vld [vmem:[#allocation2 + $0x8] sm:$0xff]
    %v118 = vld [vmem:[#allocation5] sm:$0xff]
    %v119 = vld [vmem:[#allocation5 + $0x8] sm:$0xff]
    %v120 = vld [vmem:[#allocation5 + $0x10] sm:$0xff]
    %v121 = vld [vmem:[#allocation5 + $0x18] sm:$0xff]
    %v122 = vld [vmem:[#allocation5 + $0x20] sm:$0xff]
    %v123 = vld [vmem:[#allocation5 + $0x28] sm:$0xff]
    %v124 = vld [vmem:[#allocation5 + $0x30] sm:$0xff]
    %v125 = vld [vmem:[#allocation5 + $0x38] sm:$0xff]
    %v126 = vld [vmem:[#allocation5 + $0x40] sm:$0xff]
    %v127 = vld [vmem:[#allocation5 + $0x48] sm:$0xff]
    %v128 = vld [vmem:[#allocation5 + $0x50] sm:$0xff]
    %v129 = vld [vmem:[#allocation5 + $0x58] sm:$0xff]
    %v130 = vld [vmem:[#allocation5 + $0x60] sm:$0xff]
    %v131 = vld [vmem:[#allocation5 + $0x68] sm:$0xff]
    %v132 = vld [vmem:[#allocation5 + $0x70] sm:$0xff]
    %v133 = vld [vmem:[#allocation5 + $0x78] sm:$0xff]
    %v134 = vld [vmem:[#allocation10] sm:$0x1]
    %v136 = vlaneseq
    %v137 = vshrl.u32 %v136, 7
    %v138 = vsub.s32 0, %v137
    %v139 = vrot.slane %v134, %v138
    %141 = vmatprep.subr.mxu0 0.0
    %142 = vmatpush1.msra.mxu0 %v118
    %143 = vmatprep.subr.mxu0 0.0
    %144 = vmatpush1.msra.mxu0 %v119
    %145 = vmatprep.subr.mxu0 0.0
    %146 = vmatpush1.msra.mxu0 %v120
    %147 = vmatprep.subr.mxu0 0.0
    %148 = vmatpush1.msra.mxu0 %v121
    %149 = vmatprep.subr.mxu0 0.0
    %150 = vmatpush1.msra.mxu0 %v122
    %151 = vmatprep.subr.mxu0 0.0
    %152 = vmatpush1.msra.mxu0 %v123
    %153 = vmatprep.subr.mxu0 0.0
    %154 = vmatpush1.msra.mxu0 %v124
    %155 = vmatprep.subr.mxu0 0.0
    %156 = vmatpush1.msra.mxu0 %v125
    %157 = vmatprep.subr.mxu0 0.0
    %158 = vmatpush1.msra.mxu0 %v126
    %159 = vmatprep.subr.mxu0 0.0
    %160 = vmatpush1.msra.mxu0 %v127
    %161 = vmatprep.subr.mxu0 0.0
    %162 = vmatpush1.msra.mxu0 %v128
    %163 = vmatprep.subr.mxu0 0.0
    %164 = vmatpush1.msra.mxu0 %v129
    %165 = vmatprep.subr.mxu0 0.0
    %166 = vmatpush1.msra.mxu0 %v130
    %167 = vmatprep.subr.mxu0 0.0
    %168 = vmatpush1.msra.mxu0 %v131
    %169 = vmatprep.subr.mxu0 0.0
    %170 = vmatpush1.msra.mxu0 %v132
    %171 = vmatprep.subr.mxu0 0.0
    %172 = vmatpush1.msra.mxu0 %v133
    %173 = vmatprep.subr.mxu0 0.0
    %174 = vmatpush1.msra.mxu0 0.0
    %175 = vmatprep.subr.mxu0 0.0
    %176 = vmatpush1.msra.mxu0 0.0
    %177 = vmatprep.subr.mxu0 0.0
    %178 = vmatpush1.msra.mxu0 0.0
    %179 = vmatprep.subr.mxu0 0.0
    %180 = vmatpush1.msra.mxu0 0.0
    %181 = vmatprep.subr.mxu0 0.0
    %182 = vmatpush1.msra.mxu0 0.0
    %183 = vmatprep.subr.mxu0 0.0
    %184 = vmatpush1.msra.mxu0 0.0
    %185 = vmatprep.subr.mxu0 0.0
    %186 = vmatpush1.msra.mxu0 0.0
    %187 = vmatprep.subr.mxu0 0.0
    %188 = vmatpush1.msra.mxu0 0.0
    %189 = vmatprep.subr.mxu0 0.0
    %190 = vmatpush1.msra.mxu0 0.0
    %191 = vmatprep.subr.mxu0 0.0
    %192 = vmatpush1.msra.mxu0 0.0
    %193 = vmatprep.subr.mxu0 0.0
    %194 = vmatpush1.msra.mxu0 0.0
    %195 = vmatprep.subr.mxu0 0.0
    %196 = vmatpush1.msra.mxu0 0.0
    %197 = vmatprep.subr.mxu0 0.0
    %198 = vmatpush1.msra.mxu0 0.0
    %199 = vmatprep.subr.mxu0 0.0
    %200 = vmatpush1.msra.mxu0 0.0
    %201 = vmatprep.subr.mxu0 0.0
    %202 = vmatpush1.msra.mxu0 0.0
    %203 = vmatprep.subr.mxu0 0.0
    %204 = vmatpush1.msra.mxu0 0.0
    %205 = vmatprep.mubr.f32.mxu0 0.0
    %206 = vmatmul.mubr.f32.gmra.mrb[0].mxu0 %v116
    %v207 = vpop.f32.mrb[0].mxu0
    %v208 = vadd.f32 %v139, %v207
    %v209 = vpop.f32.mrb[0].mxu0
    %210 = vmatprep.mubr.f32.mxu0 0.0
    %211 = vmatmul.mubr.f32.gmra.mrb[0].mxu0 %v117
    %v212 = vpop.f32.mrb[0].mxu0
    %v213 = vadd.f32 %v139, %v212
    %v214 = vpop.f32.mrb[0].mxu0
    %215 = vdwg.mxu0
    %v216 = vmax.f32 %v208, 0.0
    %v217 = vmax.f32 %v213, 0.0
    %v218 = vld [vmem:[#allocation7] sm:$0xff]
    %v219 = vld [vmem:[#allocation7 + $0x8] sm:$0xff]
    %v220 = vld [vmem:[#allocation7 + $0x10] sm:$0xff]
    %v221 = vld [vmem:[#allocation7 + $0x18] sm:$0xff]
    %v222 = vld [vmem:[#allocation7 + $0x20] sm:$0xff]
    %v223 = vld [vmem:[#allocation7 + $0x28] sm:$0xff]
    %v224 = vld [vmem:[#allocation7 + $0x30] sm:$0xff]
    %v225 = vld [vmem:[#allocation7 + $0x38] sm:$0xff]
    %v226 = vld [vmem:[#allocation7 + $0x40] sm:$0xff]
    %v227 = vld [vmem:[#allocation7 + $0x48] sm:$0xff]
    %v228 = vld [vmem:[#allocation7 + $0x50] sm:$0xff]
    %v229 = vld [vmem:[#allocation7 + $0x58] sm:$0xff]
    %v230 = vld [vmem:[#allocation7 + $0x60] sm:$0xff]
    %v231 = vld [vmem:[#allocation7 + $0x68] sm:$0xff]
    %v232 = vld [vmem:[#allocation7 + $0x70] sm:$0xff]
    %v233 = vld [vmem:[#allocation7 + $0x78] sm:$0xff]
    %v234 = vld [vmem:[#allocation11] sm:$0x1]
    %v236 = vlaneseq
    %v237 = vshrl.u32 %v236, 7
    %v238 = vsub.s32 0, %v237
    %v239 = vrot.slane %v234, %v238
    %241 = vmatprep.subr.mxu0 0.0
    %242 = vmatpush1.msra.mxu0 %v218
    %243 = vmatprep.subr.mxu0 0.0
    %244 = vmatpush1.msra.mxu0 %v219
    %245 = vmatprep.subr.mxu0 0.0
    %246 = vmatpush1.msra.mxu0 %v220
    %247 = vmatprep.subr.mxu0 0.0
    %248 = vmatpush1.msra.mxu0 %v221
    %249 = vmatprep.subr.mxu0 0.0
    %250 = vmatpush1.msra.mxu0 %v222
    %251 = vmatprep.subr.mxu0 0.0
    %252 = vmatpush1.msra.mxu0 %v223
    %253 = vmatprep.subr.mxu0 0.0
    %254 = vmatpush1.msra.mxu0 %v224
    %255 = vmatprep.subr.mxu0 0.0
    %256 = vmatpush1.msra.mxu0 %v225
    %257 = vmatprep.subr.mxu0 0.0
    %258 = vmatpush1.msra.mxu0 %v226
    %259 = vmatprep.subr.mxu0 0.0
    %260 = vmatpush1.msra.mxu0 %v227
    %261 = vmatprep.subr.mxu0 0.0
    %262 = vmatpush1.msra.mxu0 %v228
    %263 = vmatprep.subr.mxu0 0.0
    %264 = vmatpush1.msra.mxu0 %v229
    %265 = vmatprep.subr.mxu0 0.0
    %266 = vmatpush1.msra.mxu0 %v230
    %267 = vmatprep.subr.mxu0 0.0
    %268 = vmatpush1.msra.mxu0 %v231
    %269 = vmatprep.subr.mxu0 0.0
    %270 = vmatpush1.msra.mxu0 %v232
    %271 = vmatprep.subr.mxu0 0.0
    %272 = vmatpush1.msra.mxu0 %v233
    %273 = vmatprep.subr.mxu0 0.0
    %274 = vmatpush1.msra.mxu0 0.0
    %275 = vmatprep.subr.mxu0 0.0
    %276 = vmatpush1.msra.mxu0 0.0
    %277 = vmatprep.subr.mxu0 0.0
    %278 = vmatpush1.msra.mxu0 0.0
    %279 = vmatprep.subr.mxu0 0.0
    %280 = vmatpush1.msra.mxu0 0.0
    %281 = vmatprep.subr.mxu0 0.0
    %282 = vmatpush1.msra.mxu0 0.0
    %283 = vmatprep.subr.mxu0 0.0
    %284 = vmatpush1.msra.mxu0 0.0
    %285 = vmatprep.subr.mxu0 0.0
    %286 = vmatpush1.msra.mxu0 0.0
    %287 = vmatprep.subr.mxu0 0.0
    %288 = vmatpush1.msra.mxu0 0.0
    %289 = vmatprep.subr.mxu0 0.0
    %290 = vmatpush1.msra.mxu0 0.0
    %291 = vmatprep.subr.mxu0 0.0
    %292 = vmatpush1.msra.mxu0 0.0
    %293 = vmatprep.subr.mxu0 0.0
    %294 = vmatpush1.msra.mxu0 0.0
    %295 = vmatprep.subr.mxu0 0.0
    %296 = vmatpush1.msra.mxu0 0.0
    %297 = vmatprep.subr.mxu0 0.0
    %298 = vmatpush1.msra.mxu0 0.0
    %299 = vmatprep.subr.mxu0 0.0
    %300 = vmatpush1.msra.mxu0 0.0
    %301 = vmatprep.subr.mxu0 0.0
    %302 = vmatpush1.msra.mxu0 0.0
    %303 = vmatprep.subr.mxu0 0.0
    %304 = vmatpush1.msra.mxu0 0.0
    %305 = vmatprep.mubr.f32.mxu0 0.0
    %306 = vmatmul.mubr.f32.gmra.mrb[0].mxu0 %v216
    %v307 = vpop.f32.mrb[0].mxu0
    %v308 = vadd.f32 %v239, %v307
    %v309 = vpop.f32.mrb[0].mxu0
    %310 = vmatprep.mubr.f32.mxu0 0.0
    %311 = vmatmul.mubr.f32.gmra.mrb[0].mxu0 %v217
    %v312 = vpop.f32.mrb[0].mxu0
    %v313 = vadd.f32 %v239, %v312
    %v314 = vpop.f32.mrb[0].mxu0
    %315 = vdwg.mxu0
    %v316 = vmax.f32 %v308, 0.0
    %v317 = vmax.f32 %v313, 0.0
    %v318 = vld [vmem:[#allocation8] sm:$0xff]
    %v319 = vld [vmem:[#allocation8 + $0x8] sm:$0xff]
    %v320 = vld [vmem:[#allocation8 + $0x10] sm:$0xff]
    %v321 = vld [vmem:[#allocation8 + $0x18] sm:$0xff]
    %v322 = vld [vmem:[#allocation8 + $0x20] sm:$0xff]
    %v323 = vld [vmem:[#allocation8 + $0x28] sm:$0xff]
    %v324 = vld [vmem:[#allocation8 + $0x30] sm:$0xff]
    %v325 = vld [vmem:[#allocation8 + $0x38] sm:$0xff]
    %v326 = vld [vmem:[#allocation8 + $0x40] sm:$0xff]
    %v327 = vld [vmem:[#allocation8 + $0x48] sm:$0xff]
    %v328 = vld [vmem:[#allocation8 + $0x50] sm:$0xff]
    %v329 = vld [vmem:[#allocation8 + $0x58] sm:$0xff]
    %v330 = vld [vmem:[#allocation8 + $0x60] sm:$0xff]
    %v331 = vld [vmem:[#allocation8 + $0x68] sm:$0xff]
    %v332 = vld [vmem:[#allocation8 + $0x70] sm:$0xff]
    %v333 = vld [vmem:[#allocation8 + $0x78] sm:$0xff]
    %v334 = vld [vmem:[#allocation13] sm:$0x1]
    %v336 = vlaneseq
    %v337 = vshrl.u32 %v336, 7
    %v338 = vsub.s32 0, %v337
    %v339 = vrot.slane %v334, %v338
    %341 = vmatprep.subr.mxu0 0.0
    %342 = vmatpush1.msra.mxu0 %v318
    %343 = vmatprep.subr.mxu0 0.0
    %344 = vmatpush1.msra.mxu0 %v319
    %345 = vmatprep.subr.mxu0 0.0
    %346 = vmatpush1.msra.mxu0 %v320
    %347 = vmatprep.subr.mxu0 0.0
    %348 = vmatpush1.msra.mxu0 %v321
    %349 = vmatprep.subr.mxu0 0.0
    %350 = vmatpush1.msra.mxu0 %v322
    %351 = vmatprep.subr.mxu0 0.0
    %352 = vmatpush1.msra.mxu0 %v323
    %353 = vmatprep.subr.mxu0 0.0
    %354 = vmatpush1.msra.mxu0 %v324
    %355 = vmatprep.subr.mxu0 0.0
    %356 = vmatpush1.msra.mxu0 %v325
    %357 = vmatprep.subr.mxu0 0.0
    %358 = vmatpush1.msra.mxu0 %v326
    %359 = vmatprep.subr.mxu0 0.0
    %360 = vmatpush1.msra.mxu0 %v327
    %361 = vmatprep.subr.mxu0 0.0
    %362 = vmatpush1.msra.mxu0 %v328
    %363 = vmatprep.subr.mxu0 0.0
    %364 = vmatpush1.msra.mxu0 %v329
    %365 = vmatprep.subr.mxu0 0.0
    %366 = vmatpush1.msra.mxu0 %v330
    %367 = vmatprep.subr.mxu0 0.0
    %368 = vmatpush1.msra.mxu0 %v331
    %369 = vmatprep.subr.mxu0 0.0
    %370 = vmatpush1.msra.mxu0 %v332
    %371 = vmatprep.subr.mxu0 0.0
    %372 = vmatpush1.msra.mxu0 %v333
    %373 = vmatprep.subr.mxu0 0.0
    %374 = vmatpush1.msra.mxu0 0.0
    %375 = vmatprep.subr.mxu0 0.0
    %376 = vmatpush1.msra.mxu0 0.0
    %377 = vmatprep.subr.mxu0 0.0
    %378 = vmatpush1.msra.mxu0 0.0
    %379 = vmatprep.subr.mxu0 0.0
    %380 = vmatpush1.msra.mxu0 0.0
    %381 = vmatprep.subr.mxu0 0.0
    %382 = vmatpush1.msra.mxu0 0.0
    %383 = vmatprep.subr.mxu0 0.0
    %384 = vmatpush1.msra.mxu0 0.0
    %385 = vmatprep.subr.mxu0 0.0
    %386 = vmatpush1.msra.mxu0 0.0
    %387 = vmatprep.subr.mxu0 0.0
    %388 = vmatpush1.msra.mxu0 0.0
    %389 = vmatprep.subr.mxu0 0.0
    %390 = vmatpush1.msra.mxu0 0.0
    %391 = vmatprep.subr.mxu0 0.0
    %392 = vmatpush1.msra.mxu0 0.0
    %393 = vmatprep.subr.mxu0 0.0
    %394 = vmatpush1.msra.mxu0 0.0
    %395 = vmatprep.subr.mxu0 0.0
    %396 = vmatpush1.msra.mxu0 0.0
    %397 = vmatprep.subr.mxu0 0.0
    %398 = vmatpush1.msra.mxu0 0.0
    %399 = vmatprep.subr.mxu0 0.0
    %400 = vmatpush1.msra.mxu0 0.0
    %401 = vmatprep.subr.mxu0 0.0
    %402 = vmatpush1.msra.mxu0 0.0
    %403 = vmatprep.subr.mxu0 0.0
    %404 = vmatpush1.msra.mxu0 0.0
    %405 = vmatprep.mubr.f32.mxu0 0.0
    %406 = vmatmul.mubr.f32.gmra.mrb[0].mxu0 %v316
    %v407 = vpop.f32.mrb[0].mxu0
    %v408 = vadd.f32 %v339, %v407
    %v409 = vpop.f32.mrb[0].mxu0
    %410 = vmatprep.mubr.f32.mxu0 0.0
    %411 = vmatmul.mubr.f32.gmra.mrb[0].mxu0 %v317
    %v412 = vpop.f32.mrb[0].mxu0
    %v413 = vadd.f32 %v339, %v412
    %v414 = vpop.f32.mrb[0].mxu0
    %415 = vdwg.mxu0
    %416 = vmax.xlane.f32.xlu0 %v408
    %v417 = vpop.xlane.xlu0 %416
    %418 = vmax.xlane.f32.xlu0 %v413
    %v419 = vpop.xlane.xlu0 %418
    %v420 = vsub.f32 %v408, %v417
    %v421 = vsub.f32 %v413, %v419
    %v422 = vmul.f32 %v420, 1.442695
    %v423 = vpow.pop %v422
    %v424 = vmul.f32 %v421, 1.442695
    %v425 = vpow.pop %v424
    %426 = vadd.xlane.f32.xlu0 %v423
    %v427 = vpop.xlane.xlu0 %426
    %428 = vadd.xlane.f32.xlu0 %v425
    %v429 = vpop.xlane.xlu0 %428
    %v430 = vrcp.pop %v427
    %v431 = vmul.f32 %v423, %v430
    %v432 = vrcp.pop %v429
    %v433 = vmul.f32 %v425, %v432
    %434 = vst [vmem:[#allocation14] sm:$0xff] %v431
    %435 = vst [vmem:[#allocation14 + $0x8] sm:$0xff] %v433
    // Predicated region
    $region58: #{tpu_custom_call.1} parent=1 // pred_check
      _
    $region59: #{tpu_custom_call.1} parent=1 // pred_check_branch
      %437 = sbr.rel (0) target = $region61
    $region60: #{tpu_custom_call.1} parent=1 // pred_region
      %s439 = ssub.s32 256, 256
      %440 = vsyncadd [#allocation4], %s439
      %s441 = sshll.u32 [#allocation14], 4
      %s442 = int_to_ptr.vmem [resolvable:$true] %s441
      %447 = dma.vmem_to_hbm [thread:$0]  %s442, 256, %s7, [#allocation4], 128, 128, 8
    $region61: #{tpu_custom_call.1} parent=1 // pred_fallthru
      _
    // Predicated region
    $region62: #{tpu_custom_call.1} parent=1 // pred_check
      _
    $region63: #{tpu_custom_call.1} parent=1 // pred_check_branch
      %449 = sbr.rel (0) target = $region65
    $region64: #{tpu_custom_call.1} parent=1 // pred_region
      %450 = dma.done [#allocation4], 256
    $region65: #{tpu_custom_call.1} parent=1 // pred_fallthru
      _
    %451 = vsyncpa [#allocation3], 1
    %452 = vsyncpa [#allocation6], 1
    %453 = vsyncpa [#allocation9], 1
    %454 = vsyncpa [#allocation12], 1
    %455 = vsyncpa [#allocation4], 1

</llo_original>
